<compile_context>
chip_gen: v7x
topology: tpu7x:2x2x1
jax: 0.10.0
libtpu: 0.0.40
codegen_flags: <defaults>
</compile_context>

<pallas_src>
import jax
import jax.numpy as jnp
from jax.experimental import pallas as pl
from jax.experimental.pallas import tpu as pltpu

_OUT_LANES = 128          # lane-dense padded class dimension
_NEG_PAD = -1e30          # bias pad value for the fake output lanes


# ---------------------------------------------------------------------------
# Fused MLP kernel: x @ W1 -> sigmoid -> ... -> x @ W5 -> log_softmax
# ---------------------------------------------------------------------------

def _sigmoid(x):
    # exp -> EUP, approx reciprocal -> EUP: both off the VALU critical slots.
    return pl.reciprocal(1.0 + jnp.exp(-x), approx=True)


def _dense(h_f32, w_ref, b_ref):
    # bf16 operands into the MXU, f32 accumulate, f32 bias add.
    return (jnp.dot(h_f32.astype(jnp.bfloat16), w_ref[...],
                    preferred_element_type=jnp.float32)
            + b_ref[...])


def _mlp_kernel(x_ref,
                w1_ref, b1_ref,
                w2_ref, b2_ref,
                w3_ref, b3_ref,
                w4_ref, b4_ref,
                w5_ref, b5_ref,
                o_ref):
    h = x_ref[...].astype(jnp.float32)

    h = _sigmoid(_dense(h, w1_ref, b1_ref))
    h = _sigmoid(_dense(h, w2_ref, b2_ref))
    h = _sigmoid(_dense(h, w3_ref, b3_ref))
    h = _sigmoid(_dense(h, w4_ref, b4_ref))

    # (tile_m, 128); lanes 10..127 are ~ -1e30 (zero weights + -1e30 bias pad)
    logits = _dense(h, w5_ref, b5_ref)

    # numerically stable log_softmax; padded lanes contribute exp(-huge) == 0
    m = jnp.max(logits, axis=-1, keepdims=True)
    s = logits - m
    lse = jnp.log(jnp.sum(jnp.exp(s), axis=-1, keepdims=True))
    o_ref[...] = (s - lse).astype(o_ref.dtype)   # full 128-lane unmasked store


# ---------------------------------------------------------------------------
# Wrapper
# ---------------------------------------------------------------------------

def _round_up(n, m):
    return ((n + m - 1) // m) * m


def _resident_spec(shape):
    """Full-block, constant index_map -> stays resident in VMEM across steps."""
    n = len(shape)
    return pl.BlockSpec(shape, lambda i, _n=n: (0,) * _n)


def mlp_forward(x, params, *, max_tile_m=1024):
    """x: (B, 784) f32 -> (B, 10) log-probabilities."""
    B, D = x.shape
    assert D == 784

    # torch layout (out, in) -> (in, out); weights bf16 (MXU operands),
    # biases f32 (added to the f32 accumulator).
    def prep(wi, bi):
        return (params[wi].T.astype(jnp.bfloat16),
                params[bi].reshape(1, -1).astype(jnp.float32))

    w1, b1 = prep("w1", "b1")
    w2, b2 = prep("w2", "b2")
    w3, b3 = prep("w3", "b3")
    w4, b4 = prep("w4", "b4")
    w5, b5 = prep("w5", "b5")
    n_classes = w5.shape[1]

    # Lane-dense head: pad the last layer to 128 output lanes.  Zero weights +
    # very negative bias => the extra lanes never affect max / logsumexp.
    w5 = jnp.pad(w5, ((0, 0), (0, _OUT_LANES - n_classes)))
    b5 = jnp.pad(b5, ((0, 0), (0, _OUT_LANES - n_classes)),
                 constant_values=_NEG_PAD)

    # Sublane constraint only: pad B to a multiple of 8 (at most 7 rows).
    Bp = _round_up(B, 8)
    if Bp != B:
        x = jnp.pad(x, ((0, Bp - B), (0, 0)))

    # Row tile: ~half the batch (>=2 grid steps so v7x's 2nd TC has work),
    # capped at max_tile_m.  Last tile may be partial (masked by Pallas).
    tile_m = max(8, min(max_tile_m, _round_up(pl.cdiv(B, 2), 8)))
    grid = (pl.cdiv(Bp, tile_m),)

    out = pl.pallas_call(
        _mlp_kernel,
        out_shape=jax.ShapeDtypeStruct((Bp, _OUT_LANES), jnp.float32),
        grid=grid,
        in_specs=[
            pl.BlockSpec((tile_m, D), lambda i: (i, 0)),     # x: tiled over M
            _resident_spec(w1.shape), _resident_spec(b1.shape),
            _resident_spec(w2.shape), _resident_spec(b2.shape),
            _resident_spec(w3.shape), _resident_spec(b3.shape),
            _resident_spec(w4.shape), _resident_spec(b4.shape),
            _resident_spec(w5.shape), _resident_spec(b5.shape),
        ],
        out_specs=pl.BlockSpec((tile_m, _OUT_LANES), lambda i: (i, 0)),
        compiler_params=pltpu.CompilerParams(
            dimension_semantics=("parallel",),   # batch tiles are independent
        ),
    )(x, w1, b1, w2, b2, w3, b3, w4, b4, w5, b5)

    return out[:B, :n_classes]


# ---------------------------------------------------------------------------
# Parameters (torch nn.Linear layout: weight (out, in), bias (out,))
# ---------------------------------------------------------------------------

_LAYER_DIMS = [(784, 200), (200, 100), (100, 60), (60, 30), (30, 10)]


def init_params(key):
    params = {}
    keys = jax.random.split(key, 2 * len(_LAYER_DIMS))
    for li, (fan_in, fan_out) in enumerate(_LAYER_DIMS):
        kw, kb = keys[2 * li], keys[2 * li + 1]
        bound = 1.0 / jnp.sqrt(fan_in)
        params[f"w{li + 1}"] = jax.random.uniform(
            kw, (fan_out, fan_in), jnp.float32, -bound, bound)
        params[f"b{li + 1}"] = jax.random.uniform(
            kb, (fan_out,), jnp.float32, -bound, bound)
    return params


@jax.jit
def minst2_forward(x, params):
    return mlp_forward(x, params)


# ---------------------------------------------------------------------------
# Main
# ---------------------------------------------------------------------------

if __name__ == "__main__":
    key = jax.random.PRNGKey(0)
    k_in, k_par = jax.random.split(key)

    x = jax.random.normal(k_in, (2, 784), jnp.float32)   # batch=2, 28*28 pixels
    params = init_params(k_par)

    out = minst2_forward(x, params)
    out = jax.block_until_ready(out)

    assert out.shape == (2, 10)
    # log_softmax sanity: exp(rows) must sum to ~1
    assert jnp.allclose(jnp.exp(out).sum(axis=1), 1.0, atol=1e-4)

    # reference check against plain (f32) JAX; tolerance loosened for the
    # bf16 MXU operands + approx-reciprocal sigmoid.
    def ref_forward(x, p):
        h = x
        for i in range(1, 5):
            h = jax.nn.sigmoid(h @ p[f"w{i}"].T + p[f"b{i}"])
        logits = h @ p["w5"].T + p["b5"]
        return jax.nn.log_softmax(logits, axis=-1)

    ref = ref_forward(x, params)
    assert jnp.allclose(out, ref, atol=5e-2, rtol=5e-2)

    print("KERNEL_OK")
</pallas_src>

<mosaic_0001>
module attributes {stable_mosaic.version = 11 : i64} {
  func.func @_mlp_kernel(%arg0: i32, %arg1: memref<8x784xf32, #tpu.memory_space<vmem>>, %arg2: memref<784x200xbf16, #tpu.memory_space<vmem>>, %arg3: memref<1x200xf32, #tpu.memory_space<vmem>>, %arg4: memref<200x100xbf16, #tpu.memory_space<vmem>>, %arg5: memref<1x100xf32, #tpu.memory_space<vmem>>, %arg6: memref<100x60xbf16, #tpu.memory_space<vmem>>, %arg7: memref<1x60xf32, #tpu.memory_space<vmem>>, %arg8: memref<60x30xbf16, #tpu.memory_space<vmem>>, %arg9: memref<1x30xf32, #tpu.memory_space<vmem>>, %arg10: memref<30x128xbf16, #tpu.memory_space<vmem>>, %arg11: memref<1x128xf32, #tpu.memory_space<vmem>>, %arg12: memref<8x128xf32, #tpu.memory_space<vmem>>) attributes {dimension_semantics = [#tpu.dimension_semantics<parallel>], iteration_bounds = array<i64: 1>, scalar_prefetch = 0 : i64, scratch_operands = 0 : i64, tpu.core_type = #tpu.core_type<tc>, window_params = [{transform_indices = @transform_0, window_bounds = array<i64: 8, 784>}, {pipeline_mode = #tpu.pipeline_mode<synchronous>, transform_indices = @transform_1, window_bounds = array<i64: 784, 200>}, {pipeline_mode = #tpu.pipeline_mode<synchronous>, transform_indices = @transform_2, window_bounds = array<i64: 1, 200>}, {pipeline_mode = #tpu.pipeline_mode<synchronous>, transform_indices = @transform_3, window_bounds = array<i64: 200, 100>}, {pipeline_mode = #tpu.pipeline_mode<synchronous>, transform_indices = @transform_4, window_bounds = array<i64: 1, 100>}, {pipeline_mode = #tpu.pipeline_mode<synchronous>, transform_indices = @transform_5, window_bounds = array<i64: 100, 60>}, {pipeline_mode = #tpu.pipeline_mode<synchronous>, transform_indices = @transform_6, window_bounds = array<i64: 1, 60>}, {pipeline_mode = #tpu.pipeline_mode<synchronous>, transform_indices = @transform_7, window_bounds = array<i64: 60, 30>}, {pipeline_mode = #tpu.pipeline_mode<synchronous>, transform_indices = @transform_8, window_bounds = array<i64: 1, 30>}, {pipeline_mode = #tpu.pipeline_mode<synchronous>, transform_indices = @transform_9, window_bounds = array<i64: 30, 128>}, {pipeline_mode = #tpu.pipeline_mode<synchronous>, transform_indices = @transform_10, window_bounds = array<i64: 1, 128>}, {transform_indices = @transform_11, window_bounds = array<i64: 8, 128>}]} {
    %c0 = arith.constant 0 : index
    %c0_0 = arith.constant 0 : index
    %0 = vector.load %arg1[%c0, %c0_0] : memref<8x784xf32, #tpu.memory_space<vmem>>, vector<8x784xf32>
    %1 = arith.truncf %0 : vector<8x784xf32> to vector<8x784xbf16>
    %c0_1 = arith.constant 0 : index
    %c0_2 = arith.constant 0 : index
    %2 = vector.load %arg2[%c0_1, %c0_2] : memref<784x200xbf16, #tpu.memory_space<vmem>>, vector<784x200xbf16>
    %cst = arith.constant dense<0.000000e+00> : vector<8x200xf32>
    %3 = tpu.matmul %1, %2, %cst {dimension_numbers = #tpu.dot_dimension_numbers<[1], [0], [0], [1], [0, 0, 1, 1], [], []>} : vector<8x784xbf16>, vector<784x200xbf16>, vector<8x200xf32> -> vector<8x200xf32>
    %c0_3 = arith.constant 0 : index
    %c0_4 = arith.constant 0 : index
    %4 = vector.load %arg3[%c0_3, %c0_4] : memref<1x200xf32, #tpu.memory_space<vmem>>, vector<1x200xf32>
    %5 = vector.broadcast %4 : vector<1x200xf32> to vector<8x200xf32>
    %6 = arith.addf %3, %5 : vector<8x200xf32>
    %cst_5 = arith.constant 0.000000e+00 : f32
    %7 = vector.broadcast %cst_5 : f32 to vector<8x200xf32>
    %8 = arith.subf %7, %6 : vector<8x200xf32>
    %9 = math.exp %8 : vector<8x200xf32>
    %cst_6 = arith.constant 1.000000e+00 : f32
    %10 = vector.broadcast %cst_6 : f32 to vector<8x200xf32>
    %11 = arith.addf %10, %9 : vector<8x200xf32>
    %12 = tpu.reciprocal %11 {approx = true} : vector<8x200xf32> -> vector<8x200xf32>
    %13 = arith.truncf %12 : vector<8x200xf32> to vector<8x200xbf16>
    %c0_7 = arith.constant 0 : index
    %c0_8 = arith.constant 0 : index
    %14 = vector.load %arg4[%c0_7, %c0_8] : memref<200x100xbf16, #tpu.memory_space<vmem>>, vector<200x100xbf16>
    %cst_9 = arith.constant dense<0.000000e+00> : vector<8x100xf32>
    %15 = tpu.matmul %13, %14, %cst_9 {dimension_numbers = #tpu.dot_dimension_numbers<[1], [0], [0], [1], [0, 0, 1, 1], [], []>} : vector<8x200xbf16>, vector<200x100xbf16>, vector<8x100xf32> -> vector<8x100xf32>
    %c0_10 = arith.constant 0 : index
    %c0_11 = arith.constant 0 : index
    %16 = vector.load %arg5[%c0_10, %c0_11] : memref<1x100xf32, #tpu.memory_space<vmem>>, vector<1x100xf32>
    %17 = vector.broadcast %16 : vector<1x100xf32> to vector<8x100xf32>
    %18 = arith.addf %15, %17 : vector<8x100xf32>
    %cst_12 = arith.constant 0.000000e+00 : f32
    %19 = vector.broadcast %cst_12 : f32 to vector<8x100xf32>
    %20 = arith.subf %19, %18 : vector<8x100xf32>
    %21 = math.exp %20 : vector<8x100xf32>
    %cst_13 = arith.constant 1.000000e+00 : f32
    %22 = vector.broadcast %cst_13 : f32 to vector<8x100xf32>
    %23 = arith.addf %22, %21 : vector<8x100xf32>
    %24 = tpu.reciprocal %23 {approx = true} : vector<8x100xf32> -> vector<8x100xf32>
    %25 = arith.truncf %24 : vector<8x100xf32> to vector<8x100xbf16>
    %c0_14 = arith.constant 0 : index
    %c0_15 = arith.constant 0 : index
    %26 = vector.load %arg6[%c0_14, %c0_15] : memref<100x60xbf16, #tpu.memory_space<vmem>>, vector<100x60xbf16>
    %cst_16 = arith.constant dense<0.000000e+00> : vector<8x60xf32>
    %27 = tpu.matmul %25, %26, %cst_16 {dimension_numbers = #tpu.dot_dimension_numbers<[1], [0], [0], [1], [0, 0, 1, 1], [], []>} : vector<8x100xbf16>, vector<100x60xbf16>, vector<8x60xf32> -> vector<8x60xf32>
    %c0_17 = arith.constant 0 : index
    %c0_18 = arith.constant 0 : index
    %28 = vector.load %arg7[%c0_17, %c0_18] : memref<1x60xf32, #tpu.memory_space<vmem>>, vector<1x60xf32>
    %29 = vector.broadcast %28 : vector<1x60xf32> to vector<8x60xf32>
    %30 = arith.addf %27, %29 : vector<8x60xf32>
    %cst_19 = arith.constant 0.000000e+00 : f32
    %31 = vector.broadcast %cst_19 : f32 to vector<8x60xf32>
    %32 = arith.subf %31, %30 : vector<8x60xf32>
    %33 = math.exp %32 : vector<8x60xf32>
    %cst_20 = arith.constant 1.000000e+00 : f32
    %34 = vector.broadcast %cst_20 : f32 to vector<8x60xf32>
    %35 = arith.addf %34, %33 : vector<8x60xf32>
    %36 = tpu.reciprocal %35 {approx = true} : vector<8x60xf32> -> vector<8x60xf32>
    %37 = arith.truncf %36 : vector<8x60xf32> to vector<8x60xbf16>
    %c0_21 = arith.constant 0 : index
    %c0_22 = arith.constant 0 : index
    %38 = vector.load %arg8[%c0_21, %c0_22] : memref<60x30xbf16, #tpu.memory_space<vmem>>, vector<60x30xbf16>
    %cst_23 = arith.constant dense<0.000000e+00> : vector<8x30xf32>
    %39 = tpu.matmul %37, %38, %cst_23 {dimension_numbers = #tpu.dot_dimension_numbers<[1], [0], [0], [1], [0, 0, 1, 1], [], []>} : vector<8x60xbf16>, vector<60x30xbf16>, vector<8x30xf32> -> vector<8x30xf32>
    %c0_24 = arith.constant 0 : index
    %c0_25 = arith.constant 0 : index
    %40 = vector.load %arg9[%c0_24, %c0_25] : memref<1x30xf32, #tpu.memory_space<vmem>>, vector<1x30xf32>
    %41 = vector.broadcast %40 : vector<1x30xf32> to vector<8x30xf32>
    %42 = arith.addf %39, %41 : vector<8x30xf32>
    %cst_26 = arith.constant 0.000000e+00 : f32
    %43 = vector.broadcast %cst_26 : f32 to vector<8x30xf32>
    %44 = arith.subf %43, %42 : vector<8x30xf32>
    %45 = math.exp %44 : vector<8x30xf32>
    %cst_27 = arith.constant 1.000000e+00 : f32
    %46 = vector.broadcast %cst_27 : f32 to vector<8x30xf32>
    %47 = arith.addf %46, %45 : vector<8x30xf32>
    %48 = tpu.reciprocal %47 {approx = true} : vector<8x30xf32> -> vector<8x30xf32>
    %49 = arith.truncf %48 : vector<8x30xf32> to vector<8x30xbf16>
    %c0_28 = arith.constant 0 : index
    %c0_29 = arith.constant 0 : index
    %50 = vector.load %arg10[%c0_28, %c0_29] : memref<30x128xbf16, #tpu.memory_space<vmem>>, vector<30x128xbf16>
    %cst_30 = arith.constant dense<0.000000e+00> : vector<8x128xf32>
    %51 = tpu.matmul %49, %50, %cst_30 {dimension_numbers = #tpu.dot_dimension_numbers<[1], [0], [0], [1], [0, 0, 1, 1], [], []>} : vector<8x30xbf16>, vector<30x128xbf16>, vector<8x128xf32> -> vector<8x128xf32>
    %c0_31 = arith.constant 0 : index
    %c0_32 = arith.constant 0 : index
    %52 = vector.load %arg11[%c0_31, %c0_32] : memref<1x128xf32, #tpu.memory_space<vmem>>, vector<1x128xf32>
    %53 = vector.broadcast %52 : vector<1x128xf32> to vector<8x128xf32>
    %54 = arith.addf %51, %53 : vector<8x128xf32>
    %cst_33 = arith.constant dense<0xFF800000> : vector<8xf32>
    %55 = vector.multi_reduction <maximumf>, %54, %cst_33 [1] : vector<8x128xf32> to vector<8xf32>
    %56 = vector.shape_cast %55 : vector<8xf32> to vector<8x1xf32>
    %57 = vector.broadcast %56 : vector<8x1xf32> to vector<8x128xf32>
    %58 = arith.subf %54, %57 : vector<8x128xf32>
    %59 = math.exp %58 : vector<8x128xf32>
    %cst_34 = arith.constant dense<0.000000e+00> : vector<8xf32>
    %60 = vector.multi_reduction <add>, %59, %cst_34 [1] : vector<8x128xf32> to vector<8xf32>
    %61 = vector.shape_cast %60 : vector<8xf32> to vector<8x1xf32>
    %62 = math.log %61 : vector<8x1xf32>
    %63 = vector.broadcast %62 : vector<8x1xf32> to vector<8x128xf32>
    %64 = arith.subf %58, %63 : vector<8x128xf32>
    %c0_35 = arith.constant 0 : index
    %c0_36 = arith.constant 0 : index
    %65 = vector.load %arg12[%c0_35, %c0_36] : memref<8x128xf32, #tpu.memory_space<vmem>>, vector<8x128xf32>
    tpu.vector_store %arg12[%c0_35, %c0_36], %64 {strides = array<i32>} : memref<8x128xf32, #tpu.memory_space<vmem>>, vector<8x128xf32>,
    return
  }
  func.func @transform_0(%arg0: i32) -> (i32, i32) {
    %c0_i32 = arith.constant 0 : i32
    %c0_i32_0 = arith.constant 0 : i32
    return %arg0, %c0_i32 : i32, i32
  }
  func.func @transform_1(%arg0: i32) -> (i32, i32) {
    %c0_i32 = arith.constant 0 : i32
    %c0_i32_0 = arith.constant 0 : i32
    %c0_i32_1 = arith.constant 0 : i32
    return %c0_i32, %c0_i32_0 : i32, i32
  }
  func.func @transform_2(%arg0: i32) -> (i32, i32) {
    %c0_i32 = arith.constant 0 : i32
    %c0_i32_0 = arith.constant 0 : i32
    %c0_i32_1 = arith.constant 0 : i32
    return %c0_i32, %c0_i32_0 : i32, i32
  }
  func.func @transform_3(%arg0: i32) -> (i32, i32) {
    %c0_i32 = arith.constant 0 : i32
    %c0_i32_0 = arith.constant 0 : i32
    %c0_i32_1 = arith.constant 0 : i32
    return %c0_i32, %c0_i32_0 : i32, i32
  }
  func.func @transform_4(%arg0: i32) -> (i32, i32) {
    %c0_i32 = arith.constant 0 : i32
    %c0_i32_0 = arith.constant 0 : i32
    %c0_i32_1 = arith.constant 0 : i32
    return %c0_i32, %c0_i32_0 : i32, i32
  }
  func.func @transform_5(%arg0: i32) -> (i32, i32) {
    %c0_i32 = arith.constant 0 : i32
    %c0_i32_0 = arith.constant 0 : i32
    %c0_i32_1 = arith.constant 0 : i32
    return %c0_i32, %c0_i32_0 : i32, i32
  }
  func.func @transform_6(%arg0: i32) -> (i32, i32) {
    %c0_i32 = arith.constant 0 : i32
    %c0_i32_0 = arith.constant 0 : i32
    %c0_i32_1 = arith.constant 0 : i32
    return %c0_i32, %c0_i32_0 : i32, i32
  }
  func.func @transform_7(%arg0: i32) -> (i32, i32) {
    %c0_i32 = arith.constant 0 : i32
    %c0_i32_0 = arith.constant 0 : i32
    %c0_i32_1 = arith.constant 0 : i32
    return %c0_i32, %c0_i32_0 : i32, i32
  }
  func.func @transform_8(%arg0: i32) -> (i32, i32) {
    %c0_i32 = arith.constant 0 : i32
    %c0_i32_0 = arith.constant 0 : i32
    %c0_i32_1 = arith.constant 0 : i32
    return %c0_i32, %c0_i32_0 : i32, i32
  }
  func.func @transform_9(%arg0: i32) -> (i32, i32) {
    %c0_i32 = arith.constant 0 : i32
    %c0_i32_0 = arith.constant 0 : i32
    %c0_i32_1 = arith.constant 0 : i32
    return %c0_i32, %c0_i32_0 : i32, i32
  }
  func.func @transform_10(%arg0: i32) -> (i32, i32) {
    %c0_i32 = arith.constant 0 : i32
    %c0_i32_0 = arith.constant 0 : i32
    %c0_i32_1 = arith.constant 0 : i32
    return %c0_i32, %c0_i32_0 : i32, i32
  }
  func.func @transform_11(%arg0: i32) -> (i32, i32) {
    %c0_i32 = arith.constant 0 : i32
    %c0_i32_0 = arith.constant 0 : i32
    return %arg0, %c0_i32 : i32, i32
  }
}

</mosaic_0001>

<llo_original>
// kernel: minst2_forward.1
$region0: #{minst2_forward.1}
  #allocation0 [shape = 'u32[]', space=smem, size = 0x4, offset = 0x4, fixed_abs, tag = 'smem constant byte address 0x4 - core index']
  #allocation1 [shape = 'u32[144,128]{1,0:T(1,128)}', space=vmem, size = 0x12000, scoped, tag = 'internal scratch']
  %s0 = inlined_call_operand.vmem [shape: f32[8,784], index: 0, kind: input, shape index: {}]
  %s1 = inlined_call_operand.vmem [shape: bf16[784,200], index: 1, kind: input, shape index: {}]
  %s2 = inlined_call_operand.vmem [shape: f32[1,200], index: 2, kind: input, shape index: {}]
  %s3 = inlined_call_operand.vmem [shape: bf16[200,100], index: 3, kind: input, shape index: {}]
  %s4 = inlined_call_operand.vmem [shape: f32[1,100], index: 4, kind: input, shape index: {}]
  %s5 = inlined_call_operand.vmem [shape: bf16[100,60], index: 5, kind: input, shape index: {}]
  %s6 = inlined_call_operand.vmem [shape: f32[1,60], index: 6, kind: input, shape index: {}]
  %s7 = inlined_call_operand.vmem [shape: bf16[60,30], index: 7, kind: input, shape index: {}]
  %s8 = inlined_call_operand.vmem [shape: f32[1,30], index: 8, kind: input, shape index: {}]
  %s9 = inlined_call_operand.vmem [shape: bf16[30,128], index: 9, kind: input, shape index: {}]
  %s10 = inlined_call_operand.vmem [shape: f32[1,128], index: 10, kind: input, shape index: {}]
  %s11 = inlined_call_operand.vmem [shape: f32[8,128], index: 11, kind: output, shape index: {}]
  %s12 = sld [smem:[#allocation0]]
  $region54: #{minst2_forward.1} parent=0
    _
  %s14 = ssub.s32 1, %s12
  %s15 = scalar_select 0, %s14, %s12
  // Predicated region
  $region2: #{minst2_forward.1} parent=0 // pred_check
    _
  $region3: #{minst2_forward.1} parent=0 // pred_check_branch
    %17 = sbr.rel (0) target = $region5
  $region4: #{minst2_forward.1} parent=0 // pred_region
    _
  $region5: #{minst2_forward.1} parent=0 // pred_fallthru
    _
  // Predicated region
  $region6: #{minst2_forward.1} parent=0 // pred_check
    _
  $region7: #{minst2_forward.1} parent=0 // pred_check_branch
    %19 = sbr.rel (0) target = $region9
  $region8: #{minst2_forward.1} parent=0 // pred_region
    _
  $region9: #{minst2_forward.1} parent=0 // pred_fallthru
    _
  // Predicated region
  $region10: #{minst2_forward.1} parent=0 // pred_check
    _
  $region11: #{minst2_forward.1} parent=0 // pred_check_branch
    %21 = sbr.rel (0) target = $region13
  $region12: #{minst2_forward.1} parent=0 // pred_region
    _
  $region13: #{minst2_forward.1} parent=0 // pred_fallthru
    _
  // Predicated region
  $region14: #{minst2_forward.1} parent=0 // pred_check
    _
  $region15: #{minst2_forward.1} parent=0 // pred_check_branch
    %23 = sbr.rel (0) target = $region17
  $region16: #{minst2_forward.1} parent=0 // pred_region
    _
  $region17: #{minst2_forward.1} parent=0 // pred_fallthru
    _
  // Predicated region
  $region18: #{minst2_forward.1} parent=0 // pred_check
    _
  $region19: #{minst2_forward.1} parent=0 // pred_check_branch
    %25 = sbr.rel (0) target = $region21
  $region20: #{minst2_forward.1} parent=0 // pred_region
    _
  $region21: #{minst2_forward.1} parent=0 // pred_fallthru
    _
  // Predicated region
  $region22: #{minst2_forward.1} parent=0 // pred_check
    _
  $region23: #{minst2_forward.1} parent=0 // pred_check_branch
    %27 = sbr.rel (0) target = $region25
  $region24: #{minst2_forward.1} parent=0 // pred_region
    _
  $region25: #{minst2_forward.1} parent=0 // pred_fallthru
    _
  // Predicated region
  $region26: #{minst2_forward.1} parent=0 // pred_check
    _
  $region27: #{minst2_forward.1} parent=0 // pred_check_branch
    %29 = sbr.rel (0) target = $region29
  $region28: #{minst2_forward.1} parent=0 // pred_region
    _
  $region29: #{minst2_forward.1} parent=0 // pred_fallthru
    _
  // Predicated region
  $region30: #{minst2_forward.1} parent=0 // pred_check
    _
  $region31: #{minst2_forward.1} parent=0 // pred_check_branch
    %31 = sbr.rel (0) target = $region33
  $region32: #{minst2_forward.1} parent=0 // pred_region
    _
  $region33: #{minst2_forward.1} parent=0 // pred_fallthru
    _
  // Predicated region
  $region34: #{minst2_forward.1} parent=0 // pred_check
    _
  $region35: #{minst2_forward.1} parent=0 // pred_check_branch
    %33 = sbr.rel (0) target = $region37
  $region36: #{minst2_forward.1} parent=0 // pred_region
    _
  $region37: #{minst2_forward.1} parent=0 // pred_fallthru
    _
  // Predicated region
  $region38: #{minst2_forward.1} parent=0 // pred_check
    _
  $region39: #{minst2_forward.1} parent=0 // pred_check_branch
    %35 = sbr.rel (0) target = $region41
  $region40: #{minst2_forward.1} parent=0 // pred_region
    _
  $region41: #{minst2_forward.1} parent=0 // pred_fallthru
    _
  // Predicated region
  $region42: #{minst2_forward.1} parent=0 // pred_check
    _
  $region43: #{minst2_forward.1} parent=0 // pred_check_branch
    %37 = sbr.rel (0) target = $region45
  $region44: #{minst2_forward.1} parent=0 // pred_region
    _
  $region45: #{minst2_forward.1} parent=0 // pred_fallthru
    _
  %v39 = vld [vmem:[%s0] sm:$0xff]
  %v40 = vld [vmem:[%s0 + $0x8] sm:$0xff]
  %v41 = vld [vmem:[%s0 + $0x10] sm:$0xff]
  %v42 = vld [vmem:[%s0 + $0x18] sm:$0xff]
  %v43 = vld [vmem:[%s0 + $0x20] sm:$0xff]
  %v44 = vld [vmem:[%s0 + $0x28] sm:$0xff]
  %v45 = vld [vmem:[%s0 + $0x30] sm:$0xff]
  %v46 = vpack.c.bf16 %v39, %v39
  %v47 = vpack.c.bf16 %v40, %v40
  %v48 = vpack.c.bf16 %v41, %v41
  %v49 = vpack.c.bf16 %v42, %v42
  %v50 = vpack.c.bf16 %v43, %v43
  %v51 = vpack.c.bf16 %v44, %v44
  %v52 = vpack.c.bf16 %v45, %v45
  %v53 = vld [vmem:[%s1] sm:$0xff]
  %v54 = vld [vmem:[%s1 + $0x8] sm:$0xff]
  %v55 = vld [vmem:[%s1 + $0x10] sm:$0xff]
  %v56 = vld [vmem:[%s1 + $0x18] sm:$0xff]
  %v57 = vld [vmem:[%s1 + $0x20] sm:$0xff]
  %v58 = vld [vmem:[%s1 + $0x28] sm:$0xff]
  %v59 = vld [vmem:[%s1 + $0x30] sm:$0xff]
  %v60 = vld [vmem:[%s1 + $0x38] sm:$0xff]
  %v61 = vld [vmem:[%s1 + $0x40] sm:$0xff]
  %v62 = vld [vmem:[%s1 + $0x48] sm:$0xff]
  %v63 = vld [vmem:[%s1 + $0x50] sm:$0xff]
  %v64 = vld [vmem:[%s1 + $0x58] sm:$0xff]
  %v65 = vld [vmem:[%s1 + $0x60] sm:$0xff]
  %v66 = vld [vmem:[%s1 + $0x68] sm:$0xff]
  %v67 = vld [vmem:[%s1 + $0x70] sm:$0xff]
  %v68 = vld [vmem:[%s1 + $0x78] sm:$0xff]
  %v69 = vld [vmem:[%s1 + $0x80] sm:$0xff]
  %v70 = vld [vmem:[%s1 + $0x88] sm:$0xff]
  %v71 = vld [vmem:[%s1 + $0x90] sm:$0xff]
  %v72 = vld [vmem:[%s1 + $0x98] sm:$0xff]
  %v73 = vld [vmem:[%s1 + $0xa0] sm:$0xff]
  %v74 = vld [vmem:[%s1 + $0xa8] sm:$0xff]
  %v75 = vld [vmem:[%s1 + $0xb0] sm:$0xff]
  %v76 = vld [vmem:[%s1 + $0xb8] sm:$0xff]
  %v77 = vld [vmem:[%s1 + $0xc0] sm:$0xff]
  %v78 = vld [vmem:[%s1 + $0xc8] sm:$0xff]
  %v79 = vld [vmem:[%s1 + $0xd0] sm:$0xff]
  %v80 = vld [vmem:[%s1 + $0xd8] sm:$0xff]
  %v81 = vld [vmem:[%s1 + $0xe0] sm:$0xff]
  %v82 = vld [vmem:[%s1 + $0xe8] sm:$0xff]
  %v83 = vld [vmem:[%s1 + $0xf0] sm:$0xff]
  %v84 = vld [vmem:[%s1 + $0xf8] sm:$0xff]
  %v85 = vld [vmem:[%s1 + $0x100] sm:$0xff]
  %v86 = vld [vmem:[%s1 + $0x108] sm:$0xff]
  %v87 = vld [vmem:[%s1 + $0x110] sm:$0xff]
  %v88 = vld [vmem:[%s1 + $0x118] sm:$0xff]
  %v89 = vld [vmem:[%s1 + $0x120] sm:$0xff]
  %v90 = vld [vmem:[%s1 + $0x128] sm:$0xff]
  %v91 = vld [vmem:[%s1 + $0x130] sm:$0xff]
  %v92 = vld [vmem:[%s1 + $0x138] sm:$0xff]
  %v93 = vld [vmem:[%s1 + $0x140] sm:$0xff]
  %v94 = vld [vmem:[%s1 + $0x148] sm:$0xff]
  %v95 = vld [vmem:[%s1 + $0x150] sm:$0xff]
  %v96 = vld [vmem:[%s1 + $0x158] sm:$0xff]
  %v97 = vld [vmem:[%s1 + $0x160] sm:$0xff]
  %v98 = vld [vmem:[%s1 + $0x168] sm:$0xff]
  %v99 = vld [vmem:[%s1 + $0x170] sm:$0xff]
  %v100 = vld [vmem:[%s1 + $0x178] sm:$0xff]
  %v101 = vld [vmem:[%s1 + $0x180] sm:$0xff]
  %v102 = vld [vmem:[%s1 + $0x188] sm:$0xff]
  %v103 = vld [vmem:[%s1 + $0x190] sm:$0xff]
  %v104 = vld [vmem:[%s1 + $0x198] sm:$0xff]
  %v105 = vld [vmem:[%s1 + $0x1a0] sm:$0xff]
  %v106 = vld [vmem:[%s1 + $0x1a8] sm:$0xff]
  %v107 = vld [vmem:[%s1 + $0x1b0] sm:$0xff]
  %v108 = vld [vmem:[%s1 + $0x1b8] sm:$0xff]
  %v109 = vld [vmem:[%s1 + $0x1c0] sm:$0xff]
  %v110 = vld [vmem:[%s1 + $0x1c8] sm:$0xff]
  %v111 = vld [vmem:[%s1 + $0x1d0] sm:$0xff]
  %v112 = vld [vmem:[%s1 + $0x1d8] sm:$0xff]
  %v113 = vld [vmem:[%s1 + $0x1e0] sm:$0xff]
  %v114 = vld [vmem:[%s1 + $0x1e8] sm:$0xff]
  %v115 = vld [vmem:[%s1 + $0x1f0] sm:$0xff]
  %v116 = vld [vmem:[%s1 + $0x1f8] sm:$0xff]
  %v117 = vld [vmem:[%s1 + $0x200] sm:$0xff]
  %v118 = vld [vmem:[%s1 + $0x208] sm:$0xff]
  %v119 = vld [vmem:[%s1 + $0x210] sm:$0xff]
  %v120 = vld [vmem:[%s1 + $0x218] sm:$0xff]
  %v121 = vld [vmem:[%s1 + $0x220] sm:$0xff]
  %v122 = vld [vmem:[%s1 + $0x228] sm:$0xff]
  %v123 = vld [vmem:[%s1 + $0x230] sm:$0xff]
  %v124 = vld [vmem:[%s1 + $0x238] sm:$0xff]
  %v125 = vld [vmem:[%s1 + $0x240] sm:$0xff]
  %v126 = vld [vmem:[%s1 + $0x248] sm:$0xff]
  %v127 = vld [vmem:[%s1 + $0x250] sm:$0xff]
  %v128 = vld [vmem:[%s1 + $0x258] sm:$0xff]
  %v129 = vld [vmem:[%s1 + $0x260] sm:$0xff]
  %v130 = vld [vmem:[%s1 + $0x268] sm:$0xff]
  %v131 = vld [vmem:[%s1 + $0x270] sm:$0xff]
  %v132 = vld [vmem:[%s1 + $0x278] sm:$0xff]
  %v133 = vld [vmem:[%s1 + $0x280] sm:$0xff]
  %v134 = vld [vmem:[%s1 + $0x288] sm:$0xff]
  %v135 = vld [vmem:[%s1 + $0x290] sm:$0xff]
  %v136 = vld [vmem:[%s1 + $0x298] sm:$0xff]
  %v137 = vld [vmem:[%s1 + $0x2a0] sm:$0xff]
  %v138 = vld [vmem:[%s1 + $0x2a8] sm:$0xff]
  %v139 = vld [vmem:[%s1 + $0x2b0] sm:$0xff]
  %v140 = vld [vmem:[%s1 + $0x2b8] sm:$0xff]
  %v141 = vld [vmem:[%s1 + $0x2c0] sm:$0xff]
  %v142 = vld [vmem:[%s1 + $0x2c8] sm:$0xff]
  %v143 = vld [vmem:[%s1 + $0x2d0] sm:$0xff]
  %v144 = vld [vmem:[%s1 + $0x2d8] sm:$0xff]
  %v145 = vld [vmem:[%s1 + $0x2e0] sm:$0xff]
  %v146 = vld [vmem:[%s1 + $0x2e8] sm:$0xff]
  %v147 = vld [vmem:[%s1 + $0x2f0] sm:$0xff]
  %v148 = vld [vmem:[%s1 + $0x2f8] sm:$0xff]
  %v149 = vld [vmem:[%s1 + $0x300] sm:$0xff]
  %v150 = vld [vmem:[%s1 + $0x308] sm:$0xff]
  %v151 = vld [vmem:[%s2] sm:$0x3]
  %v153 = vlaneseq
  %v154 = vshrl.u32 %v153, 7
  %v155 = vsub.s32 0, %v154
  %v156 = vrot.slane %v151, %v155
  %v157 = vlaneseq
  %v158 = vshrl.u32 %v157, 7
  %v159 = vsub.s32 1, %v158
  %v160 = vrot.slane %v151, %v159
  %v261 = vunpack.c.l.b16 %v53
  %v262 = vunpack.c.h.b16 %v53
  %v263 = vunpack.c.l.b16 %v54
  %v264 = vunpack.c.h.b16 %v54
  %v265 = vunpack.c.l.b16 %v55
  %v266 = vunpack.c.h.b16 %v55
  %v267 = vunpack.c.l.b16 %v56
  %v268 = vunpack.c.h.b16 %v56
  %v269 = vunpack.c.l.b16 %v57
  %v270 = vunpack.c.h.b16 %v57
  %v271 = vunpack.c.l.b16 %v58
  %v272 = vunpack.c.h.b16 %v58
  %v273 = vunpack.c.l.b16 %v59
  %v274 = vunpack.c.h.b16 %v59
  %v275 = vunpack.c.l.b16 %v60
  %v276 = vunpack.c.h.b16 %v60
  %v277 = vunpack.c.l.b16 %v61
  %v278 = vunpack.c.h.b16 %v61
  %v279 = vunpack.c.l.b16 %v62
  %v280 = vunpack.c.h.b16 %v62
  %v281 = vunpack.c.l.b16 %v63
  %v282 = vunpack.c.h.b16 %v63
  %v283 = vunpack.c.l.b16 %v64
  %v284 = vunpack.c.h.b16 %v64
  %v285 = vunpack.c.l.b16 %v65
  %v286 = vunpack.c.h.b16 %v65
  %v287 = vunpack.c.l.b16 %v66
  %v288 = vunpack.c.h.b16 %v66
  %v289 = vunpack.c.l.b16 %v67
  %v290 = vunpack.c.h.b16 %v67
  %v291 = vunpack.c.l.b16 %v68
  %v292 = vunpack.c.h.b16 %v68
  %v293 = vunpack.c.l.b16 %v69
  %v294 = vunpack.c.h.b16 %v69
  %v295 = vunpack.c.l.b16 %v70
  %v296 = vunpack.c.h.b16 %v70
  %v297 = vunpack.c.l.b16 %v71
  %v298 = vunpack.c.h.b16 %v71
  %v299 = vunpack.c.l.b16 %v72
  %v300 = vunpack.c.h.b16 %v72
  %v301 = vunpack.c.l.b16 %v73
  %v302 = vunpack.c.h.b16 %v73
  %v303 = vunpack.c.l.b16 %v74
  %v304 = vunpack.c.h.b16 %v74
  %v305 = vunpack.c.l.b16 %v75
  %v306 = vunpack.c.h.b16 %v75
  %v307 = vunpack.c.l.b16 %v76
  %v308 = vunpack.c.h.b16 %v76
  %v309 = vunpack.c.l.b16 %v77
  %v310 = vunpack.c.h.b16 %v77
  %v311 = vunpack.c.l.b16 %v78
  %v312 = vunpack.c.h.b16 %v78
  %v313 = vunpack.c.l.b16 %v79
  %v314 = vunpack.c.h.b16 %v79
  %v315 = vunpack.c.l.b16 %v80
  %v316 = vunpack.c.h.b16 %v80
  %v317 = vunpack.c.l.b16 %v81
  %v318 = vunpack.c.h.b16 %v81
  %v319 = vunpack.c.l.b16 %v82
  %v320 = vunpack.c.h.b16 %v82
  %v321 = vunpack.c.l.b16 %v83
  %v322 = vunpack.c.h.b16 %v83
  %v323 = vunpack.c.l.b16 %v84
  %v324 = vunpack.c.h.b16 %v84
  %v325 = vunpack.c.l.b16 %v85
  %v326 = vunpack.c.h.b16 %v85
  %v327 = vunpack.c.l.b16 %v86
  %v328 = vunpack.c.h.b16 %v86
  %v329 = vunpack.c.l.b16 %v87
  %v330 = vunpack.c.h.b16 %v87
  %v331 = vunpack.c.l.b16 %v88
  %v332 = vunpack.c.h.b16 %v88
  %v333 = vunpack.c.l.b16 %v89
  %v334 = vunpack.c.h.b16 %v89
  %v335 = vunpack.c.l.b16 %v90
  %v336 = vunpack.c.h.b16 %v90
  %v337 = vunpack.c.l.b16 %v91
  %v338 = vunpack.c.h.b16 %v91
  %v339 = vunpack.c.l.b16 %v92
  %v340 = vunpack.c.h.b16 %v92
  %v341 = vunpack.c.l.b16 %v93
  %v342 = vunpack.c.h.b16 %v93
  %v343 = vunpack.c.l.b16 %v94
  %v344 = vunpack.c.h.b16 %v94
  %v345 = vunpack.c.l.b16 %v95
  %v346 = vunpack.c.h.b16 %v95
  %v347 = vunpack.c.l.b16 %v96
  %v348 = vunpack.c.h.b16 %v96
  %v349 = vunpack.c.l.b16 %v97
  %v350 = vunpack.c.h.b16 %v97
  %v351 = vunpack.c.l.b16 %v98
  %v352 = vunpack.c.h.b16 %v98
  %v353 = vunpack.c.l.b16 %v99
  %v354 = vunpack.c.h.b16 %v99
  %v355 = vunpack.c.l.b16 %v100
  %v356 = vunpack.c.h.b16 %v100
  %v357 = vunpack.c.l.b16 %v101
  %v358 = vunpack.c.h.b16 %v101
  %v359 = vunpack.c.l.b16 %v102
  %v360 = vunpack.c.h.b16 %v102
  %v361 = vunpack.c.l.b16 %v103
  %v362 = vunpack.c.h.b16 %v103
  %v363 = vunpack.c.l.b16 %v104
  %v364 = vunpack.c.h.b16 %v104
  %v365 = vunpack.c.l.b16 %v105
  %v366 = vunpack.c.h.b16 %v105
  %v367 = vunpack.c.l.b16 %v106
  %v368 = vunpack.c.h.b16 %v106
  %v369 = vunpack.c.l.b16 %v107
  %v370 = vunpack.c.h.b16 %v107
  %v371 = vunpack.c.l.b16 %v108
  %v372 = vunpack.c.h.b16 %v108
  %v373 = vunpack.c.l.b16 %v109
  %v374 = vunpack.c.h.b16 %v109
  %v375 = vunpack.c.l.b16 %v110
  %v376 = vunpack.c.h.b16 %v110
  %v377 = vunpack.c.l.b16 %v111
  %v378 = vunpack.c.h.b16 %v111
  %v379 = vunpack.c.l.b16 %v112
  %v380 = vunpack.c.h.b16 %v112
  %v381 = vunpack.c.l.b16 %v113
  %v382 = vunpack.c.h.b16 %v113
  %v383 = vunpack.c.l.b16 %v114
  %v384 = vunpack.c.h.b16 %v114
  %v385 = vunpack.c.l.b16 %v115
  %v386 = vunpack.c.h.b16 %v115
  %v387 = vunpack.c.l.b16 %v116
  %v388 = vunpack.c.h.b16 %v116
  %v389 = vunpack.c.l.b16 %v117
  %v390 = vunpack.c.h.b16 %v117
  %v391 = vunpack.c.l.b16 %v118
  %v392 = vunpack.c.h.b16 %v118
  %v393 = vunpack.c.l.b16 %v119
  %v394 = vunpack.c.h.b16 %v119
  %v395 = vunpack.c.l.b16 %v120
  %v396 = vunpack.c.h.b16 %v120
  %v397 = vunpack.c.l.b16 %v121
  %v398 = vunpack.c.h.b16 %v121
  %v399 = vunpack.c.l.b16 %v122
  %v400 = vunpack.c.h.b16 %v122
  %v401 = vunpack.c.l.b16 %v123
  %v402 = vunpack.c.h.b16 %v123
  %v403 = vunpack.c.l.b16 %v124
  %v404 = vunpack.c.h.b16 %v124
  %v405 = vunpack.c.l.b16 %v125
  %v406 = vunpack.c.h.b16 %v125
  %v407 = vunpack.c.l.b16 %v126
  %v408 = vunpack.c.h.b16 %v126
  %v409 = vunpack.c.l.b16 %v127
  %v410 = vunpack.c.h.b16 %v127
  %v411 = vunpack.c.l.b16 %v128
  %v412 = vunpack.c.h.b16 %v128
  %v413 = vunpack.c.l.b16 %v129
  %v414 = vunpack.c.h.b16 %v129
  %v415 = vunpack.c.l.b16 %v130
  %v416 = vunpack.c.h.b16 %v130
  %v417 = vunpack.c.l.b16 %v131
  %v418 = vunpack.c.h.b16 %v131
  %v419 = vunpack.c.l.b16 %v132
  %v420 = vunpack.c.h.b16 %v132
  %v421 = vunpack.c.l.b16 %v133
  %v422 = vunpack.c.h.b16 %v133
  %v423 = vunpack.c.l.b16 %v134
  %v424 = vunpack.c.h.b16 %v134
  %v425 = vunpack.c.l.b16 %v135
  %v426 = vunpack.c.h.b16 %v135
  %v427 = vunpack.c.l.b16 %v136
  %v428 = vunpack.c.h.b16 %v136
  %v429 = vunpack.c.l.b16 %v137
  %v430 = vunpack.c.h.b16 %v137
  %v431 = vunpack.c.l.b16 %v138
  %v432 = vunpack.c.h.b16 %v138
  %v433 = vunpack.c.l.b16 %v139
  %v434 = vunpack.c.h.b16 %v139
  %v435 = vunpack.c.l.b16 %v140
  %v436 = vunpack.c.h.b16 %v140
  %v437 = vunpack.c.l.b16 %v141
  %v438 = vunpack.c.h.b16 %v141
  %v439 = vunpack.c.l.b16 %v142
  %v440 = vunpack.c.h.b16 %v142
  %v441 = vunpack.c.l.b16 %v143
  %v442 = vunpack.c.h.b16 %v143
  %v443 = vunpack.c.l.b16 %v144
  %v444 = vunpack.c.h.b16 %v144
  %v445 = vunpack.c.l.b16 %v145
  %v446 = vunpack.c.h.b16 %v145
  %v447 = vunpack.c.l.b16 %v146
  %v448 = vunpack.c.h.b16 %v146
  %v449 = vunpack.c.l.b16 %v147
  %v450 = vunpack.c.h.b16 %v147
  %v451 = vunpack.c.l.b16 %v148
  %v452 = vunpack.c.h.b16 %v148
  %v453 = vunpack.c.l.b16 %v149
  %v454 = vunpack.c.h.b16 %v149
  %v455 = vunpack.c.l.b16 %v150
  %v456 = vunpack.c.h.b16 %v150
  %v457 = vpack.c.b16 %v263, %v261
  %v458 = vpack.c.b16 %v264, %v262
  %v459 = vpack.c.b16 %v267, %v265
  %v460 = vpack.c.b16 %v268, %v266
  %v461 = vpack.c.b16 %v271, %v269
  %v462 = vpack.c.b16 %v272, %v270
  %v463 = vpack.c.b16 %v275, %v273
  %v464 = vpack.c.b16 %v276, %v274
  %v465 = vpack.c.b16 %v279, %v277
  %v466 = vpack.c.b16 %v280, %v278
  %v467 = vpack.c.b16 %v283, %v281
  %v468 = vpack.c.b16 %v284, %v282
  %v469 = vpack.c.b16 %v287, %v285
  %v470 = vpack.c.b16 %v288, %v286
  %v471 = vpack.c.b16 %v291, %v289
  %v472 = vpack.c.b16 %v292, %v290
  %v473 = vpack.c.b16 %v295, %v293
  %v474 = vpack.c.b16 %v296, %v294
  %v475 = vpack.c.b16 %v299, %v297
  %v476 = vpack.c.b16 %v300, %v298
  %v477 = vpack.c.b16 %v303, %v301
  %v478 = vpack.c.b16 %v304, %v302
  %v479 = vpack.c.b16 %v307, %v305
  %v480 = vpack.c.b16 %v308, %v306
  %v481 = vpack.c.b16 %v311, %v309
  %v482 = vpack.c.b16 %v312, %v310
  %v483 = vpack.c.b16 %v315, %v313
  %v484 = vpack.c.b16 %v316, %v314
  %v485 = vpack.c.b16 %v319, %v317
  %v486 = vpack.c.b16 %v320, %v318
  %v487 = vpack.c.b16 %v323, %v321
  %v488 = vpack.c.b16 %v324, %v322
  %v489 = vpack.c.b16 %v327, %v325
  %v490 = vpack.c.b16 %v328, %v326
  %v491 = vpack.c.b16 %v331, %v329
  %v492 = vpack.c.b16 %v332, %v330
  %v493 = vpack.c.b16 %v335, %v333
  %v494 = vpack.c.b16 %v336, %v334
  %v495 = vpack.c.b16 %v339, %v337
  %v496 = vpack.c.b16 %v340, %v338
  %v497 = vpack.c.b16 %v343, %v341
  %v498 = vpack.c.b16 %v344, %v342
  %v499 = vpack.c.b16 %v347, %v345
  %v500 = vpack.c.b16 %v348, %v346
  %v501 = vpack.c.b16 %v351, %v349
  %v502 = vpack.c.b16 %v352, %v350
  %v503 = vpack.c.b16 %v355, %v353
  %v504 = vpack.c.b16 %v356, %v354
  %v505 = vpack.c.b16 %v359, %v357
  %v506 = vpack.c.b16 %v360, %v358
  %v507 = vpack.c.b16 %v363, %v361
  %v508 = vpack.c.b16 %v364, %v362
  %v509 = vpack.c.b16 %v367, %v365
  %v510 = vpack.c.b16 %v368, %v366
  %v511 = vpack.c.b16 %v371, %v369
  %v512 = vpack.c.b16 %v372, %v370
  %v513 = vpack.c.b16 %v375, %v373
  %v514 = vpack.c.b16 %v376, %v374
  %v515 = vpack.c.b16 %v379, %v377
  %v516 = vpack.c.b16 %v380, %v378
  %v517 = vpack.c.b16 %v383, %v381
  %v518 = vpack.c.b16 %v384, %v382
  %v519 = vpack.c.b16 %v387, %v385
  %v520 = vpack.c.b16 %v388, %v386
  %v521 = vpack.c.b16 %v391, %v389
  %v522 = vpack.c.b16 %v392, %v390
  %v523 = vpack.c.b16 %v395, %v393
  %v524 = vpack.c.b16 %v396, %v394
  %v525 = vpack.c.b16 %v399, %v397
  %v526 = vpack.c.b16 %v400, %v398
  %v527 = vpack.c.b16 %v403, %v401
  %v528 = vpack.c.b16 %v404, %v402
  %v529 = vpack.c.b16 %v407, %v405
  %v530 = vpack.c.b16 %v408, %v406
  %v531 = vpack.c.b16 %v411, %v409
  %v532 = vpack.c.b16 %v412, %v410
  %v533 = vpack.c.b16 %v415, %v413
  %v534 = vpack.c.b16 %v416, %v414
  %v535 = vpack.c.b16 %v419, %v417
  %v536 = vpack.c.b16 %v420, %v418
  %v537 = vpack.c.b16 %v423, %v421
  %v538 = vpack.c.b16 %v424, %v422
  %v539 = vpack.c.b16 %v427, %v425
  %v540 = vpack.c.b16 %v428, %v426
  %v541 = vpack.c.b16 %v431, %v429
  %v542 = vpack.c.b16 %v432, %v430
  %v543 = vpack.c.b16 %v435, %v433
  %v544 = vpack.c.b16 %v436, %v434
  %v545 = vpack.c.b16 %v439, %v437
  %v546 = vpack.c.b16 %v440, %v438
  %v547 = vpack.c.b16 %v443, %v441
  %v548 = vpack.c.b16 %v444, %v442
  %v549 = vpack.c.b16 %v447, %v445
  %v550 = vpack.c.b16 %v448, %v446
  %v551 = vpack.c.b16 %v451, %v449
  %v552 = vpack.c.b16 %v452, %v450
  %v553 = vpack.c.b16 %v455, %v453
  %v554 = vpack.c.b16 %v456, %v454
  %vm653 = vcmask 130048
  %v655 = vsel %vm653, %v52, 0
  %657 = vmatprep.subr.bf16.mxu0 %v458
  %658 = vmatpush1.bf16.msra.mxu0 %v457
  %659 = vmatprep.subr.bf16.mxu0 %v460
  %660 = vmatpush1.bf16.msra.mxu0 %v459
  %661 = vmatprep.subr.bf16.mxu0 %v462
  %662 = vmatpush1.bf16.msra.mxu0 %v461
  %663 = vmatprep.subr.bf16.mxu0 %v464
  %664 = vmatpush1.bf16.msra.mxu0 %v463
  %665 = vmatprep.subr.bf16.mxu0 %v466
  %666 = vmatpush1.bf16.msra.mxu0 %v465
  %667 = vmatprep.subr.bf16.mxu0 %v468
  %668 = vmatpush1.bf16.msra.mxu0 %v467
  %669 = vmatprep.subr.bf16.mxu0 %v470
  %670 = vmatpush1.bf16.msra.mxu0 %v469
  %671 = vmatprep.subr.bf16.mxu0 %v472
  %672 = vmatpush1.bf16.msra.mxu0 %v471
  %673 = vmatprep.subr.bf16.mxu0 %v474
  %674 = vmatpush1.bf16.msra.mxu0 %v473
  %675 = vmatprep.subr.bf16.mxu0 %v476
  %676 = vmatpush1.bf16.msra.mxu0 %v475
  %677 = vmatprep.subr.bf16.mxu0 %v478
  %678 = vmatpush1.bf16.msra.mxu0 %v477
  %679 = vmatprep.subr.bf16.mxu0 %v480
  %680 = vmatpush1.bf16.msra.mxu0 %v479
  %681 = vmatprep.subr.bf16.mxu0 %v482
  %682 = vmatpush1.bf16.msra.mxu0 %v481
  %683 = vmatprep.subr.bf16.mxu0 %v484
  %684 = vmatpush1.bf16.msra.mxu0 %v483
  %685 = vmatprep.subr.bf16.mxu0 %v486
  %686 = vmatpush1.bf16.msra.mxu0 %v485
  %687 = vmatprep.subr.bf16.mxu0 %v488
  %688 = vmatpush1.bf16.msra.mxu0 %v487
  %689 = vmatprep.mubr.bf16.mxu0 %v47
  %690 = vmatmul.mubr.bf16.gmra.mrb[0].mxu0 %v46
  %v691 = vpop.f32.mrb[0].mxu0
  %v692 = vadd.f32 %v156, %v691
  %v693 = vpop.f32.mrb[0].mxu0
  %v694 = vadd.f32 %v160, %v693
  %v695 = vpop.f32.mrb[0].mxu0
  %v696 = vpop.f32.mrb[0].mxu0
  %697 = vdwg.mxu0
  %698 = vmatprep.subr.bf16.mxu0 %v490
  %699 = vmatpush1.bf16.msra.mxu0 %v489
  %700 = vmatprep.subr.bf16.mxu0 %v492
  %701 = vmatpush1.bf16.msra.mxu0 %v491
  %702 = vmatprep.subr.bf16.mxu0 %v494
  %703 = vmatpush1.bf16.msra.mxu0 %v493
  %704 = vmatprep.subr.bf16.mxu0 %v496
  %705 = vmatpush1.bf16.msra.mxu0 %v495
  %706 = vmatprep.subr.bf16.mxu0 %v498
  %707 = vmatpush1.bf16.msra.mxu0 %v497
  %708 = vmatprep.subr.bf16.mxu0 %v500
  %709 = vmatpush1.bf16.msra.mxu0 %v499
  %710 = vmatprep.subr.bf16.mxu0 %v502
  %711 = vmatpush1.bf16.msra.mxu0 %v501
  %712 = vmatprep.subr.bf16.mxu0 %v504
  %713 = vmatpush1.bf16.msra.mxu0 %v503
  %714 = vmatprep.subr.bf16.mxu0 %v506
  %715 = vmatpush1.bf16.msra.mxu0 %v505
  %716 = vmatprep.subr.bf16.mxu0 %v508
  %717 = vmatpush1.bf16.msra.mxu0 %v507
  %718 = vmatprep.subr.bf16.mxu0 %v510
  %719 = vmatpush1.bf16.msra.mxu0 %v509
  %720 = vmatprep.subr.bf16.mxu0 %v512
  %721 = vmatpush1.bf16.msra.mxu0 %v511
  %722 = vmatprep.subr.bf16.mxu0 %v514
  %723 = vmatpush1.bf16.msra.mxu0 %v513
  %724 = vmatprep.subr.bf16.mxu0 %v516
  %725 = vmatpush1.bf16.msra.mxu0 %v515
  %726 = vmatprep.subr.bf16.mxu0 %v518
  %727 = vmatpush1.bf16.msra.mxu0 %v517
  %728 = vmatprep.subr.bf16.mxu0 %v520
  %729 = vmatpush1.bf16.msra.mxu0 %v519
  %730 = vmatprep.mubr.bf16.mxu0 %v49
  %731 = vmatmul.mubr.bf16.gmra.mrb[0].mxu0 %v48
  %v732 = vpop.f32.mrb[0].mxu0
  %v733 = vadd.f32 %v692, %v732
  %v734 = vpop.f32.mrb[0].mxu0
  %v735 = vadd.f32 %v694, %v734
  %v736 = vpop.f32.mrb[0].mxu0
  %v737 = vpop.f32.mrb[0].mxu0
  %738 = vdwg.mxu0
  %739 = vmatprep.subr.bf16.mxu0 %v522
  %740 = vmatpush1.bf16.msra.mxu0 %v521
  %741 = vmatprep.subr.bf16.mxu0 %v524
  %742 = vmatpush1.bf16.msra.mxu0 %v523
  %743 = vmatprep.subr.bf16.mxu0 %v526
  %744 = vmatpush1.bf16.msra.mxu0 %v525
  %745 = vmatprep.subr.bf16.mxu0 %v528
  %746 = vmatpush1.bf16.msra.mxu0 %v527
  %747 = vmatprep.subr.bf16.mxu0 %v530
  %748 = vmatpush1.bf16.msra.mxu0 %v529
  %749 = vmatprep.subr.bf16.mxu0 %v532
  %750 = vmatpush1.bf16.msra.mxu0 %v531
  %751 = vmatprep.subr.bf16.mxu0 %v534
  %752 = vmatpush1.bf16.msra.mxu0 %v533
  %753 = vmatprep.subr.bf16.mxu0 %v536
  %754 = vmatpush1.bf16.msra.mxu0 %v535
  %755 = vmatprep.subr.bf16.mxu0 %v538
  %756 = vmatpush1.bf16.msra.mxu0 %v537
  %757 = vmatprep.subr.bf16.mxu0 %v540
  %758 = vmatpush1.bf16.msra.mxu0 %v539
  %759 = vmatprep.subr.bf16.mxu0 %v542
  %760 = vmatpush1.bf16.msra.mxu0 %v541
  %761 = vmatprep.subr.bf16.mxu0 %v544
  %762 = vmatpush1.bf16.msra.mxu0 %v543
  %763 = vmatprep.subr.bf16.mxu0 %v546
  %764 = vmatpush1.bf16.msra.mxu0 %v545
  %765 = vmatprep.subr.bf16.mxu0 %v548
  %766 = vmatpush1.bf16.msra.mxu0 %v547
  %767 = vmatprep.subr.bf16.mxu0 %v550
  %768 = vmatpush1.bf16.msra.mxu0 %v549
  %769 = vmatprep.subr.bf16.mxu0 %v552
  %770 = vmatpush1.bf16.msra.mxu0 %v551
  %771 = vmatprep.mubr.bf16.mxu0 %v51
  %772 = vmatmul.mubr.bf16.gmra.mrb[0].mxu0 %v50
  %v773 = vpop.f32.mrb[0].mxu0
  %v774 = vadd.f32 %v733, %v773
  %v775 = vpop.f32.mrb[0].mxu0
  %v776 = vadd.f32 %v735, %v775
  %v777 = vpop.f32.mrb[0].mxu0
  %v778 = vpop.f32.mrb[0].mxu0
  %779 = vdwg.mxu0
  %780 = vmatprep.subr.bf16.mxu0 %v554
  %781 = vmatpush1.bf16.msra.mxu0 %v553
  %782 = vmatprep.subr.bf16.mxu0 0
  %783 = vmatpush1.bf16.msra.mxu0 0
  %784 = vmatprep.subr.bf16.mxu0 0
  %785 = vmatpush1.bf16.msra.mxu0 0
  %786 = vmatprep.subr.bf16.mxu0 0
  %787 = vmatpush1.bf16.msra.mxu0 0
  %788 = vmatprep.subr.bf16.mxu0 0
  %789 = vmatpush1.bf16.msra.mxu0 0
  %790 = vmatprep.subr.bf16.mxu0 0
  %791 = vmatpush1.bf16.msra.mxu0 0
  %792 = vmatprep.subr.bf16.mxu0 0
  %793 = vmatpush1.bf16.msra.mxu0 0
  %794 = vmatprep.subr.bf16.mxu0 0
  %795 = vmatpush1.bf16.msra.mxu0 0
  %796 = vmatprep.subr.bf16.mxu0 0
  %797 = vmatpush1.bf16.msra.mxu0 0
  %798 = vmatprep.subr.bf16.mxu0 0
  %799 = vmatpush1.bf16.msra.mxu0 0
  %800 = vmatprep.subr.bf16.mxu0 0
  %801 = vmatpush1.bf16.msra.mxu0 0
  %802 = vmatprep.subr.bf16.mxu0 0
  %803 = vmatpush1.bf16.msra.mxu0 0
  %804 = vmatprep.subr.bf16.mxu0 0
  %805 = vmatpush1.bf16.msra.mxu0 0
  %806 = vmatprep.subr.bf16.mxu0 0
  %807 = vmatpush1.bf16.msra.mxu0 0
  %808 = vmatprep.subr.bf16.mxu0 0
  %809 = vmatpush1.bf16.msra.mxu0 0
  %810 = vmatprep.subr.bf16.mxu0 0
  %811 = vmatpush1.bf16.msra.mxu0 0
  %812 = vmatprep.mubr.bf16.mxu0 0
  %813 = vmatmul.mubr.bf16.gmra.mrb[0].mxu0 %v655
  %v814 = vpop.f32.mrb[0].mxu0
  %v815 = vadd.f32 %v774, %v814
  %v816 = vpop.f32.mrb[0].mxu0
  %v817 = vadd.f32 %v776, %v816
  %v818 = vpop.f32.mrb[0].mxu0
  %v819 = vpop.f32.mrb[0].mxu0
  %820 = vdwg.mxu0
  %v821 = vsub.f32 0.0, %v815
  %v822 = vsub.f32 0.0, %v817
  %v823 = vmul.f32 %v821, 1.442695
  %v824 = vpow.pop %v823
  %v825 = vmul.f32 %v822, 1.442695
  %v826 = vpow.pop %v825
  %v827 = vadd.f32 %v824, 1.0
  %v828 = vadd.f32 %v826, 1.0
  %v829 = vrcp.pop %v827
  %v830 = vrcp.pop %v828
  %v831 = vpack.c.bf16 %v829, %v829
  %v832 = vpack.c.bf16 %v830, %v830
  %v833 = vld [vmem:[%s3] sm:$0xf]
  %v834 = vld [vmem:[%s3 + $0x4] sm:$0xf]
  %v835 = vld [vmem:[%s3 + $0x8] sm:$0xf]
  %v836 = vld [vmem:[%s3 + $0xc] sm:$0xf]
  %v837 = vld [vmem:[%s3 + $0x10] sm:$0xf]
  %v838 = vld [vmem:[%s3 + $0x14] sm:$0xf]
  %v839 = vld [vmem:[%s3 + $0x18] sm:$0xf]
  %v840 = vld [vmem:[%s3 + $0x1c] sm:$0xf]
  %v841 = vld [vmem:[%s3 + $0x20] sm:$0xf]
  %v842 = vld [vmem:[%s3 + $0x24] sm:$0xf]
  %v843 = vld [vmem:[%s3 + $0x28] sm:$0xf]
  %v844 = vld [vmem:[%s3 + $0x2c] sm:$0xf]
  %v845 = vld [vmem:[%s3 + $0x30] sm:$0xf]
  %v846 = vld [vmem:[%s3 + $0x34] sm:$0xf]
  %v847 = vld [vmem:[%s3 + $0x38] sm:$0xf]
  %v848 = vld [vmem:[%s3 + $0x3c] sm:$0xf]
  %v849 = vld [vmem:[%s3 + $0x40] sm:$0xf]
  %v850 = vld [vmem:[%s3 + $0x44] sm:$0xf]
  %v851 = vld [vmem:[%s3 + $0x48] sm:$0xf]
  %v852 = vld [vmem:[%s3 + $0x4c] sm:$0xf]
  %v853 = vld [vmem:[%s3 + $0x50] sm:$0xf]
  %v854 = vld [vmem:[%s3 + $0x54] sm:$0xf]
  %v855 = vld [vmem:[%s3 + $0x58] sm:$0xf]
  %v856 = vld [vmem:[%s3 + $0x5c] sm:$0xf]
  %v857 = vld [vmem:[%s3 + $0x60] sm:$0xf]
  %v858 = vld [vmem:[%s4] sm:$0x1]
  %v860 = vlaneseq
  %v861 = vshrl.u32 %v860, 7
  %v862 = vsub.s32 0, %v861
  %v863 = vrot.slane %v858, %v862
  %v890 = vunpack.c.l.b16 %v833
  %v891 = vunpack.c.l.b16 %v834
  %v892 = vunpack.c.l.b16 %v835
  %v893 = vunpack.c.l.b16 %v836
  %v894 = vunpack.c.l.b16 %v837
  %v895 = vunpack.c.l.b16 %v838
  %v896 = vunpack.c.l.b16 %v839
  %v897 = vunpack.c.l.b16 %v840
  %v898 = vunpack.c.l.b16 %v841
  %v899 = vunpack.c.l.b16 %v842
  %v900 = vunpack.c.l.b16 %v843
  %v901 = vunpack.c.l.b16 %v844
  %v902 = vunpack.c.l.b16 %v845
  %v903 = vunpack.c.l.b16 %v846
  %v904 = vunpack.c.l.b16 %v847
  %v905 = vunpack.c.l.b16 %v848
  %v906 = vunpack.c.l.b16 %v849
  %v907 = vunpack.c.l.b16 %v850
  %v908 = vunpack.c.l.b16 %v851
  %v909 = vunpack.c.l.b16 %v852
  %v910 = vunpack.c.l.b16 %v853
  %v911 = vunpack.c.l.b16 %v854
  %v912 = vunpack.c.l.b16 %v855
  %v913 = vunpack.c.l.b16 %v856
  %v914 = vunpack.c.l.b16 %v857
  %v915 = vpack.c.b16 %v891, %v890
  %v916 = vpack.c.b16 %v893, %v892
  %v917 = vpack.c.b16 %v895, %v894
  %v918 = vpack.c.b16 %v897, %v896
  %v919 = vpack.c.b16 %v899, %v898
  %v920 = vpack.c.b16 %v901, %v900
  %v921 = vpack.c.b16 %v903, %v902
  %v922 = vpack.c.b16 %v905, %v904
  %v923 = vpack.c.b16 %v907, %v906
  %v924 = vpack.c.b16 %v909, %v908
  %v925 = vpack.c.b16 %v911, %v910
  %v926 = vpack.c.b16 %v913, %v912
  %v927 = vpack.c.b16 %v914, %v914
  %vm940 = vcmask 588800
  %v942 = vsel %vm940, %v832, 0
  %vm944 = vcmask 1043456
  %v946 = vsel %vm944, %v927, 0
  %948 = vmatprep.subr.bf16.mxu0 0
  %949 = vmatpush1.bf16.msra.mxu0 %v915
  %950 = vmatprep.subr.bf16.mxu0 0
  %951 = vmatpush1.bf16.msra.mxu0 %v916
  %952 = vmatprep.subr.bf16.mxu0 0
  %953 = vmatpush1.bf16.msra.mxu0 %v917
  %954 = vmatprep.subr.bf16.mxu0 0
  %955 = vmatpush1.bf16.msra.mxu0 %v918
  %956 = vmatprep.subr.bf16.mxu0 0
  %957 = vmatpush1.bf16.msra.mxu0 %v919
  %958 = vmatprep.subr.bf16.mxu0 0
  %959 = vmatpush1.bf16.msra.mxu0 %v920
  %960 = vmatprep.subr.bf16.mxu0 0
  %961 = vmatpush1.bf16.msra.mxu0 %v921
  %962 = vmatprep.subr.bf16.mxu0 0
  %963 = vmatpush1.bf16.msra.mxu0 %v922
  %964 = vmatprep.subr.bf16.mxu0 0
  %965 = vmatpush1.bf16.msra.mxu0 %v923
  %966 = vmatprep.subr.bf16.mxu0 0
  %967 = vmatpush1.bf16.msra.mxu0 %v924
  %968 = vmatprep.subr.bf16.mxu0 0
  %969 = vmatpush1.bf16.msra.mxu0 %v925
  %970 = vmatprep.subr.bf16.mxu0 0
  %971 = vmatpush1.bf16.msra.mxu0 %v926
  %972 = vmatprep.subr.bf16.mxu0 0
  %973 = vmatpush1.bf16.msra.mxu0 %v946
  %974 = vmatprep.subr.bf16.mxu0 0
  %975 = vmatpush1.bf16.msra.mxu0 0
  %976 = vmatprep.subr.bf16.mxu0 0
  %977 = vmatpush1.bf16.msra.mxu0 0
  %978 = vmatprep.subr.bf16.mxu0 0
  %979 = vmatpush1.bf16.msra.mxu0 0
  %980 = vmatprep.mubr.bf16.mxu0 %v942
  %981 = vmatmul.mubr.bf16.gmra.mrb[0].mxu0 %v831
  %v982 = vpop.f32.mrb[0].mxu0
  %v983 = vadd.f32 %v863, %v982
  %v984 = vpop.f32.mrb[0].mxu0
  %v985 = vpop.f32.mrb[0].mxu0
  %v986 = vpop.f32.mrb[0].mxu0
  %987 = vdwg.mxu0
  %v988 = vsub.f32 0.0, %v983
  %v989 = vmul.f32 %v988, 1.442695
  %v990 = vpow.pop %v989
  %v991 = vadd.f32 %v990, 1.0
  %v992 = vrcp.pop %v991
  %v993 = vpack.c.bf16 %v992, %v992
  %v994 = vld [vmem:[%s5] sm:$0xf]
  %v995 = vld [vmem:[%s5 + $0x4] sm:$0xf]
  %v996 = vld [vmem:[%s5 + $0x8] sm:$0xf]
  %v997 = vld [vmem:[%s5 + $0xc] sm:$0xf]
  %v998 = vld [vmem:[%s5 + $0x10] sm:$0xf]
  %v999 = vld [vmem:[%s5 + $0x14] sm:$0xf]
  %v1000 = vld [vmem:[%s5 + $0x18] sm:$0xf]
  %v1001 = vld [vmem:[%s5 + $0x1c] sm:$0xf]
  %v1002 = vld [vmem:[%s5 + $0x20] sm:$0xf]
  %v1003 = vld [vmem:[%s5 + $0x24] sm:$0xf]
  %v1004 = vld [vmem:[%s5 + $0x28] sm:$0xf]
  %v1005 = vld [vmem:[%s5 + $0x2c] sm:$0xf]
  %v1006 = vld [vmem:[%s5 + $0x30] sm:$0x3]
  %v1007 = vld [vmem:[%s6] sm:$0x1]
  %v1009 = vlaneseq
  %v1010 = vshrl.u32 %v1009, 7
  %v1011 = vsub.s32 0, %v1010
  %v1012 = vrot.slane %v1007, %v1011
  %v1027 = vunpack.c.l.b16 %v994
  %v1028 = vunpack.c.l.b16 %v995
  %v1029 = vunpack.c.l.b16 %v996
  %v1030 = vunpack.c.l.b16 %v997
  %v1031 = vunpack.c.l.b16 %v998
  %v1032 = vunpack.c.l.b16 %v999
  %v1033 = vunpack.c.l.b16 %v1000
  %v1034 = vunpack.c.l.b16 %v1001
  %v1035 = vunpack.c.l.b16 %v1002
  %v1036 = vunpack.c.l.b16 %v1003
  %v1037 = vunpack.c.l.b16 %v1004
  %v1038 = vunpack.c.l.b16 %v1005
  %v1039 = vunpack.c.l.b16 %v1006
  %v1040 = vpack.c.b16 %v1028, %v1027
  %v1041 = vpack.c.b16 %v1030, %v1029
  %v1042 = vpack.c.b16 %v1032, %v1031
  %v1043 = vpack.c.b16 %v1034, %v1033
  %v1044 = vpack.c.b16 %v1036, %v1035
  %v1045 = vpack.c.b16 %v1038, %v1037
  %v1046 = vpack.c.b16 %v1039, %v1039
  %vm1053 = vcmask 818176
  %v1055 = vsel %vm1053, %v993, 0
  %vm1057 = vcmask 1041408
  %v1059 = vsel %vm1057, %v1046, 0
  %1061 = vmatprep.subr.bf16.mxu0 0
  %1062 = vmatpush1.bf16.msra.mxu0 %v1040
  %1063 = vmatprep.subr.bf16.mxu0 0
  %1064 = vmatpush1.bf16.msra.mxu0 %v1041
  %1065 = vmatprep.subr.bf16.mxu0 0
  %1066 = vmatpush1.bf16.msra.mxu0 %v1042
  %1067 = vmatprep.subr.bf16.mxu0 0
  %1068 = vmatpush1.bf16.msra.mxu0 %v1043
  %1069 = vmatprep.subr.bf16.mxu0 0
  %1070 = vmatpush1.bf16.msra.mxu0 %v1044
  %1071 = vmatprep.subr.bf16.mxu0 0
  %1072 = vmatpush1.bf16.msra.mxu0 %v1045
  %1073 = vmatprep.subr.bf16.mxu0 0
  %1074 = vmatpush1.bf16.msra.mxu0 %v1059
  %1075 = vmatprep.subr.bf16.mxu0 0
  %1076 = vmatpush1.bf16.msra.mxu0 0
  %1077 = vmatprep.subr.bf16.mxu0 0
  %1078 = vmatpush1.bf16.msra.mxu0 0
  %1079 = vmatprep.subr.bf16.mxu0 0
  %1080 = vmatpush1.bf16.msra.mxu0 0
  %1081 = vmatprep.subr.bf16.mxu0 0
  %1082 = vmatpush1.bf16.msra.mxu0 0
  %1083 = vmatprep.subr.bf16.mxu0 0
  %1084 = vmatpush1.bf16.msra.mxu0 0
  %1085 = vmatprep.subr.bf16.mxu0 0
  %1086 = vmatpush1.bf16.msra.mxu0 0
  %1087 = vmatprep.subr.bf16.mxu0 0
  %1088 = vmatpush1.bf16.msra.mxu0 0
  %1089 = vmatprep.subr.bf16.mxu0 0
  %1090 = vmatpush1.bf16.msra.mxu0 0
  %1091 = vmatprep.subr.bf16.mxu0 0
  %1092 = vmatpush1.bf16.msra.mxu0 0
  %1093 = vmatprep.mubr.bf16.mxu0 0
  %1094 = vmatmul.mubr.bf16.gmra.mrb[0].mxu0 %v1055
  %v1095 = vpop.f32.mrb[0].mxu0
  %v1096 = vadd.f32 %v1012, %v1095
  %v1097 = vpop.f32.mrb[0].mxu0
  %v1098 = vpop.f32.mrb[0].mxu0
  %v1099 = vpop.f32.mrb[0].mxu0
  %1100 = vdwg.mxu0
  %v1101 = vsub.f32 0.0, %v1096
  %v1102 = vmul.f32 %v1101, 1.442695
  %v1103 = vpow.pop %v1102
  %v1104 = vadd.f32 %v1103, 1.0
  %v1105 = vrcp.pop %v1104
  %v1106 = vpack.c.bf16 %v1105, %v1105
  %v1107 = vld [vmem:[%s7] sm:$0xf]
  %v1108 = vld [vmem:[%s7 + $0x4] sm:$0xf]
  %v1109 = vld [vmem:[%s7 + $0x8] sm:$0xf]
  %v1110 = vld [vmem:[%s7 + $0xc] sm:$0xf]
  %v1111 = vld [vmem:[%s7 + $0x10] sm:$0xf]
  %v1112 = vld [vmem:[%s7 + $0x14] sm:$0xf]
  %v1113 = vld [vmem:[%s7 + $0x18] sm:$0xf]
  %v1114 = vld [vmem:[%s7 + $0x1c] sm:$0x3]
  %v1115 = vld [vmem:[%s8] sm:$0x1]
  %v1117 = vlaneseq
  %v1118 = vshrl.u32 %v1117, 7
  %v1119 = vsub.s32 0, %v1118
  %v1120 = vrot.slane %v1115, %v1119
  %v1130 = vunpack.c.l.b16 %v1107
  %v1131 = vunpack.c.l.b16 %v1108
  %v1132 = vunpack.c.l.b16 %v1109
  %v1133 = vunpack.c.l.b16 %v1110
  %v1134 = vunpack.c.l.b16 %v1111
  %v1135 = vunpack.c.l.b16 %v1112
  %v1136 = vunpack.c.l.b16 %v1113
  %v1137 = vunpack.c.l.b16 %v1114
  %v1138 = vpack.c.b16 %v1131, %v1130
  %v1139 = vpack.c.b16 %v1133, %v1132
  %v1140 = vpack.c.b16 %v1135, %v1134
  %v1141 = vpack.c.b16 %v1137, %v1136
  %vm1145 = vcmask 490496
  %v1147 = vsel %vm1145, %v1106, 0
  %vm1149 = vcmask 1045504
  %v1151 = vsel %vm1149, %v1141, 0
  %1153 = vmatprep.subr.bf16.mxu0 0
  %1154 = vmatpush1.bf16.msra.mxu0 %v1138
  %1155 = vmatprep.subr.bf16.mxu0 0
  %1156 = vmatpush1.bf16.msra.mxu0 %v1139
  %1157 = vmatprep.subr.bf16.mxu0 0
  %1158 = vmatpush1.bf16.msra.mxu0 %v1140
  %1159 = vmatprep.subr.bf16.mxu0 0
  %1160 = vmatpush1.bf16.msra.mxu0 %v1151
  %1161 = vmatprep.subr.bf16.mxu0 0
  %1162 = vmatpush1.bf16.msra.mxu0 0
  %1163 = vmatprep.subr.bf16.mxu0 0
  %1164 = vmatpush1.bf16.msra.mxu0 0
  %1165 = vmatprep.subr.bf16.mxu0 0
  %1166 = vmatpush1.bf16.msra.mxu0 0
  %1167 = vmatprep.subr.bf16.mxu0 0
  %1168 = vmatpush1.bf16.msra.mxu0 0
  %1169 = vmatprep.subr.bf16.mxu0 0
  %1170 = vmatpush1.bf16.msra.mxu0 0
  %1171 = vmatprep.subr.bf16.mxu0 0
  %1172 = vmatpush1.bf16.msra.mxu0 0
  %1173 = vmatprep.subr.bf16.mxu0 0
  %1174 = vmatpush1.bf16.msra.mxu0 0
  %1175 = vmatprep.subr.bf16.mxu0 0
  %1176 = vmatpush1.bf16.msra.mxu0 0
  %1177 = vmatprep.subr.bf16.mxu0 0
  %1178 = vmatpush1.bf16.msra.mxu0 0
  %1179 = vmatprep.subr.bf16.mxu0 0
  %1180 = vmatpush1.bf16.msra.mxu0 0
  %1181 = vmatprep.subr.bf16.mxu0 0
  %1182 = vmatpush1.bf16.msra.mxu0 0
  %1183 = vmatprep.subr.bf16.mxu0 0
  %1184 = vmatpush1.bf16.msra.mxu0 0
  %1185 = vmatprep.mubr.bf16.mxu0 0
  %1186 = vmatmul.mubr.bf16.gmra.mrb[0].mxu0 %v1147
  %v1187 = vpop.f32.mrb[0].mxu0
  %v1188 = vadd.f32 %v1120, %v1187
  %v1189 = vpop.f32.mrb[0].mxu0
  %v1190 = vpop.f32.mrb[0].mxu0
  %v1191 = vpop.f32.mrb[0].mxu0
  %1192 = vdwg.mxu0
  %v1193 = vsub.f32 0.0, %v1188
  %v1194 = vmul.f32 %v1193, 1.442695
  %v1195 = vpow.pop %v1194
  %v1196 = vadd.f32 %v1195, 1.0
  %v1197 = vrcp.pop %v1196
  %v1198 = vpack.c.bf16 %v1197, %v1197
  %v1199 = vld [vmem:[%s9] sm:$0xf]
  %v1200 = vld [vmem:[%s9 + $0x4] sm:$0xf]
  %v1201 = vld [vmem:[%s9 + $0x8] sm:$0xf]
  %v1202 = vld [vmem:[%s9 + $0xc] sm:$0x7]
  %v1203 = vld [vmem:[%s10] sm:$0x1]
  %v1205 = vlaneseq
  %v1206 = vshrl.u32 %v1205, 7
  %v1207 = vsub.s32 0, %v1206
  %v1208 = vrot.slane %v1203, %v1207
  %v1214 = vunpack.c.l.b16 %v1199
  %v1215 = vunpack.c.l.b16 %v1200
  %v1216 = vunpack.c.l.b16 %v1201
  %v1217 = vunpack.c.l.b16 %v1202
  %v1218 = vpack.c.b16 %v1215, %v1214
  %v1219 = vpack.c.b16 %v1217, %v1216
  %vm1221 = vcmask 244736
  %v1223 = vsel %vm1221, %v1198, 0
  %vm1225 = vcmask 1046528
  %v1227 = vsel %vm1225, %v1219, 0
  %1229 = vmatprep.subr.bf16.mxu0 0
  %1230 = vmatpush1.bf16.msra.mxu0 %v1218
  %1231 = vmatprep.subr.bf16.mxu0 0
  %1232 = vmatpush1.bf16.msra.mxu0 %v1227
  %1233 = vmatprep.subr.bf16.mxu0 0
  %1234 = vmatpush1.bf16.msra.mxu0 0
  %1235 = vmatprep.subr.bf16.mxu0 0
  %1236 = vmatpush1.bf16.msra.mxu0 0
  %1237 = vmatprep.subr.bf16.mxu0 0
  %1238 = vmatpush1.bf16.msra.mxu0 0
  %1239 = vmatprep.subr.bf16.mxu0 0
  %1240 = vmatpush1.bf16.msra.mxu0 0
  %1241 = vmatprep.subr.bf16.mxu0 0
  %1242 = vmatpush1.bf16.msra.mxu0 0
  %1243 = vmatprep.subr.bf16.mxu0 0
  %1244 = vmatpush1.bf16.msra.mxu0 0
  %1245 = vmatprep.subr.bf16.mxu0 0
  %1246 = vmatpush1.bf16.msra.mxu0 0
  %1247 = vmatprep.subr.bf16.mxu0 0
  %1248 = vmatpush1.bf16.msra.mxu0 0
  %1249 = vmatprep.subr.bf16.mxu0 0
  %1250 = vmatpush1.bf16.msra.mxu0 0
  %1251 = vmatprep.subr.bf16.mxu0 0
  %1252 = vmatpush1.bf16.msra.mxu0 0
  %1253 = vmatprep.subr.bf16.mxu0 0
  %1254 = vmatpush1.bf16.msra.mxu0 0
  %1255 = vmatprep.subr.bf16.mxu0 0
  %1256 = vmatpush1.bf16.msra.mxu0 0
  %1257 = vmatprep.subr.bf16.mxu0 0
  %1258 = vmatpush1.bf16.msra.mxu0 0
  %1259 = vmatprep.subr.bf16.mxu0 0
  %1260 = vmatpush1.bf16.msra.mxu0 0
  %1261 = vmatprep.mubr.bf16.mxu0 0
  %1262 = vmatmul.mubr.bf16.gmra.mrb[0].mxu0 %v1223
  %v1263 = vpop.f32.mrb[0].mxu0
  %v1264 = vadd.f32 %v1208, %v1263
  %v1265 = vpop.f32.mrb[0].mxu0
  %v1266 = vpop.f32.mrb[0].mxu0
  %v1267 = vpop.f32.mrb[0].mxu0
  %1268 = vdwg.mxu0
  %1269 = vmax.xlane.f32.xlu0 %v1264
  %v1270 = vpop.xlane.xlu0 %1269
  %v1271 = vsub.f32 %v1264, %v1270
  %v1272 = vmul.f32 %v1271, 1.442695
  %v1273 = vpow.pop %v1272
  %1274 = vadd.xlane.f32.xlu0 %v1273
  %v1275 = vpop.xlane.xlu0 %1274
  %v1276 = vlog2.pop %v1275
  %v1277 = vmul.f32 %v1276, 0.6931472
  %v1278 = vsub.f32 %v1271, %v1277
  %1279 = vst [vmem:[%s11] sm:$0xff] %v1278
  // Predicated region
  $region46: #{minst2_forward.1} parent=0 // pred_check
    _
  $region47: #{minst2_forward.1} parent=0 // pred_check_branch
    %1281 = sbr.rel (0) target = $region49
  $region48: #{minst2_forward.1} parent=0 // pred_region
    _
  $region49: #{minst2_forward.1} parent=0 // pred_fallthru
    _
  // Predicated region
  $region50: #{minst2_forward.1} parent=0 // pred_check
    _
  $region51: #{minst2_forward.1} parent=0 // pred_check_branch
    %1283 = sbr.rel (0) target = $region53
  $region52: #{minst2_forward.1} parent=0 // pred_region
    _
  $region53: #{minst2_forward.1} parent=0 // pred_fallthru
    _

</llo_original>
